<compile_context>
chip_gen: v7x
topology: tpu7x:2x2x1
jax: 0.10.0
libtpu: 0.0.40
codegen_flags: <defaults>
</compile_context>

<pallas_src>
import functools

import jax
import jax.numpy as jnp
from jax import lax
from jax.experimental import pallas as pl
from jax.experimental.pallas import tpu as pltpu


def _flash_atten_kernel(q_ref, k_ref, v_ref, o_ref, m_sc, l_sc, *acc_scratch,
                        bf16_probs=False):
    # q_ref: (bt, tq, D), k_ref: (bt, tk, D), v_ref: (bt, tk, Dvp)
    # o_ref: (bt, tq, Dvp); scratch: m/l (bt, tq, 1) f32, optional acc f32.
    use_scratch_acc = bool(acc_scratch)
    acc_ref = acc_scratch[0] if use_scratch_acc else o_ref

    kv = pl.program_id(2)

    @pl.when(kv == 0)
    def _():
        m_sc[...] = jnp.full(m_sc.shape, -jnp.inf, dtype=m_sc.dtype)
        l_sc[...] = jnp.zeros(l_sc.shape, dtype=l_sc.dtype)
        acc_ref[...] = jnp.zeros(acc_ref.shape, dtype=acc_ref.dtype)

    q = q_ref[...]
    k = k_ref[...]
    v = v_ref[...]

    # scores = q @ k^T  (contract last dims, batch dim 0) -> (bt, tq, tk);
    # no explicit transpose of k (avoids an XLU relayout every step).
    s = lax.dot_general(
        q, k,
        dimension_numbers=(((2,), (2,)), ((0,), (0,))),
        preferred_element_type=jnp.float32,
    )

    # online (flash) softmax update; statistics stay f32
    m_prev = m_sc[...]
    m_new = jnp.maximum(m_prev, jnp.max(s, axis=-1, keepdims=True))
    alpha = jnp.exp(m_prev - m_new)

    if bf16_probs:
        # v6e/v7x: bf16 EUP runs packed ~2x faster; p feeds a bf16 matmul anyway.
        p = jnp.exp((s - m_new).astype(jnp.bfloat16))
        l_upd = jnp.sum(p.astype(jnp.float32), axis=-1, keepdims=True)
    else:
        p = jnp.exp(s - m_new)
        l_upd = jnp.sum(p, axis=-1, keepdims=True)

    l_sc[...] = alpha * l_sc[...] + l_upd

    pv = lax.dot_general(
        p.astype(v.dtype), v,
        dimension_numbers=(((2,), (1,)), ((0,), (0,))),
        preferred_element_type=jnp.float32,
    )  # (bt, tq, Dvp), f32
    acc_ref[...] = alpha * acc_ref[...] + pv
    m_sc[...] = m_new

    # dropout on the attention probabilities: identity (eval mode / p = 0)

    @pl.when(kv == pl.num_programs(2) - 1)
    def _():
        inv_l = pl.reciprocal(l_sc[...], approx=True)   # EUP, once per q tile
        if use_scratch_acc:
            o_ref[...] = (acc_ref[...] * inv_l).astype(o_ref.dtype)
        else:
            o_ref[...] = acc_ref[...] * inv_l


def _chip_defaults():
    """Generation-aware tile targets / VMEM budget / feature flags."""
    vmem_cap = None
    try:
        vmem_cap = int(pltpu.get_tpu_info().vmem_capacity_bytes)
    except Exception:
        vmem_cap = None
    kind = ""
    try:
        kind = jax.devices()[0].device_kind.lower()
    except Exception:
        pass

    mib = 1024 * 1024
    is_v7 = ("v7" in kind) or (vmem_cap is not None and vmem_cap <= 80 * mib)
    is_v5 = ("v5" in kind) and not is_v7
    is_v6 = ("v6" in kind) and not is_v7

    if is_v7:
        # 64 MiB VMEM per TC, 2 TCs/chip, bf16 EUP.
        cfg = dict(tq=256, tk=256, vmem_limit=44 * mib,
                   two_cores=True, bf16_eup=True)
    elif is_v5:
        # 4x128^2 MXU, single vst slot, no bf16 VPU/EUP -> smaller tiles.
        cfg = dict(tq=128, tk=256, vmem_limit=96 * mib,
                   two_cores=False, bf16_eup=False)
    else:
        # v6e (and unknown 128 MiB chips): tk aligned to the 2x256 MXU.
        cfg = dict(tq=256, tk=512, vmem_limit=96 * mib,
                   two_cores=False, bf16_eup=is_v6)

    if vmem_cap is not None:
        cfg["vmem_limit"] = min(cfg["vmem_limit"], int(vmem_cap * 0.72))
    return cfg


def _pick_tile(n, target):
    """Largest 8-aligned divisor of n that is <= target (or n itself)."""
    if n <= target:
        return n
    for d in range(target, 7, -1):
        if n % d == 0 and d % 8 == 0:
            return d
    # No well-aligned divisor below the target: fall back to the full extent
    # (correct; only pathological sequence lengths end up here).
    return n


def self_atten(q, k, v, *, tq=None, tk=None, mxu_dtype=None, bf16_probs=None,
               kv_buffering=2, pad_out_lanes=True, vmem_limit_bytes=None):
    """Pallas equivalent of Self_atten.forward(q, k, v) (eval-mode dropout).

    mxu_dtype=jnp.bfloat16 is recommended on v5e/v6e/v7x: q/k/v are cast once
    in the wrapper (half the DMA/VMEM, ~4x MXU rate) while accumulation and
    softmax statistics stay f32.  Default None keeps exact f32 semantics.
    """
    B, Lq, D = q.shape
    Bk, Lk, Dk = k.shape
    Bv, Lkv, Dv = v.shape
    assert B == Bk == Bv and D == Dk and Lk == Lkv

    out_dtype = q.dtype
    cfg = _chip_defaults()

    # Operand dtype: cast once in the wrapper (not per kv step in the kernel).
    if mxu_dtype is not None:
        q = q.astype(mxu_dtype)
        k = k.astype(mxu_dtype)
        v = v.astype(mxu_dtype)
    if bf16_probs is None:
        bf16_probs = (mxu_dtype == jnp.bfloat16) and cfg["bf16_eup"]

    # Generation-aware tile targets; bf16 K/V blocks are half-size, so the kv
    # tile can double within the same VMEM budget.
    if tq is None:
        tq = cfg["tq"]
    if tk is None:
        tk = cfg["tk"]
        if mxu_dtype == jnp.bfloat16:
            tk *= 2
    if vmem_limit_bytes is None:
        vmem_limit_bytes = cfg["vmem_limit"]

    tq = _pick_tile(Lq, tq)
    tk = _pick_tile(Lk, tk)

    # Lane-dense output padding only when the inflation is modest: padding a
    # small Dv (e.g. 32 -> 128) would multiply V's HBM->VMEM traffic for every
    # q-tile revisit, which outweighs the once-per-q-tile masked-store saving.
    Dvp = Dv
    if pad_out_lanes and Dv % 128 != 0:
        cand = ((Dv + 127) // 128) * 128
        if cand <= Dv * 1.5:
            Dvp = cand
            v = jnp.pad(v, ((0, 0), (0, 0), (0, Dvp - Dv)))

    # Fold several batch elements per grid step when Lq is tiny (amortizes the
    # ~0.35us per-step overhead and fills MXU rows).  On dual-TC chips keep at
    # least two units of "parallel" grid work so both TensorCores are used.
    bt = 1
    if Lq <= 64:
        max_fold = max(1, 128 // max(Lq, 1))
        if cfg["two_cores"] and (Lq // tq) < 2 and B >= 2:
            max_fold = min(max_fold, B // 2)
        for cand in range(min(B, max_fold), 0, -1):
            if B % cand == 0:
                bt = cand
                break

    grid = (B // bt, Lq // tq, Lk // tk)

    # f32 outputs accumulate directly in the VMEM-resident o_ref (same output
    # block across the kv axis); otherwise keep a separate f32 accumulator.
    acc_in_out = (out_dtype == jnp.float32)
    scratch_shapes = [
        pltpu.VMEM((bt, tq, 1), jnp.float32),    # running max  m
        pltpu.VMEM((bt, tq, 1), jnp.float32),    # running sum  l
    ]
    if not acc_in_out:
        scratch_shapes.append(pltpu.VMEM((bt, tq, Dvp), jnp.float32))

    # kv-axis inputs change every innermost step; optionally buffer deeper.
    if kv_buffering == 2:
        def kv_spec(shape):
            return pl.BlockSpec(shape, lambda b, qi, ki: (b, ki, 0))
    else:
        def kv_spec(shape):
            return pl.BlockSpec(shape, lambda b, qi, ki: (b, ki, 0),
                                pipeline_mode=pl.Buffered(kv_buffering))

    kernel = functools.partial(_flash_atten_kernel, bf16_probs=bf16_probs)

    out = pl.pallas_call(
        kernel,
        out_shape=jax.ShapeDtypeStruct((B, Lq, Dvp), out_dtype),
        grid_spec=pltpu.PrefetchScalarGridSpec(
            num_scalar_prefetch=0,
            grid=grid,
            in_specs=[
                pl.BlockSpec((bt, tq, D), lambda b, qi, ki: (b, qi, 0)),
                kv_spec((bt, tk, D)),
                kv_spec((bt, tk, Dvp)),
            ],
            # same output block across the kv axis -> VMEM-resident accumulator
            out_specs=pl.BlockSpec((bt, tq, Dvp), lambda b, qi, ki: (b, qi, 0)),
            scratch_shapes=scratch_shapes,
        ),
        compiler_params=pltpu.CompilerParams(
            dimension_semantics=("parallel", "parallel", "arbitrary"),
            vmem_limit_bytes=vmem_limit_bytes,
        ),
    )(q, k, v)

    if Dvp != Dv:
        out = out[:, :, :Dv]
    return out


def _reference(q, k, v):
    s = jnp.einsum("bqd,bkd->bqk", q, k)
    p = jax.nn.softmax(s, axis=2)
    return jnp.einsum("bqk,bkd->bqd", p, v)


if __name__ == "__main__":
    root = jax.random.PRNGKey(0)
    keys = jax.random.split(root, 9)

    # --- 1) small shapes matching the module's typical use (single tile) ---
    B, Lq, Lk, D, Dv = 2, 8, 8, 32, 32
    q = jax.random.normal(keys[0], (B, Lq, D), dtype=jnp.float32)
    k = jax.random.normal(keys[1], (B, Lk, D), dtype=jnp.float32)
    v = jax.random.normal(keys[2], (B, Lk, Dv), dtype=jnp.float32)

    out = jax.block_until_ready(self_atten(q, k, v))
    ref = _reference(q, k, v)
    assert out.shape == (B, Lq, Dv)
    # Tolerance covers the approximate (EUP) reciprocal in the normalization.
    assert jnp.allclose(out, ref, atol=2e-2, rtol=2e-2), \
        float(jnp.max(jnp.abs(out - ref)))

    # --- 2) larger shapes exercising tiled multi-kv-step online softmax (f32,
    #        accumulator lives directly in the output block) ---
    B2, Lq2, Lk2, D2, Dv2 = 2, 256, 512, 64, 128
    q2 = jax.random.normal(keys[3], (B2, Lq2, D2), dtype=jnp.float32)
    k2 = jax.random.normal(keys[4], (B2, Lk2, D2), dtype=jnp.float32)
    v2 = jax.random.normal(keys[5], (B2, Lk2, Dv2), dtype=jnp.float32)

    out2 = jax.block_until_ready(self_atten(q2, k2, v2, tq=128, tk=128))
    ref2 = _reference(q2, k2, v2)
    assert out2.shape == (B2, Lq2, Dv2)
    assert jnp.allclose(out2, ref2, atol=2e-2, rtol=2e-2), \
        float(jnp.max(jnp.abs(out2 - ref2)))

    # --- 3) bf16 MXU path (wrapper-side cast, f32 accumulation/statistics,
    #        bf16 exp on v6e/v7x); compared against the f32 reference with a
    #        tolerance sized for bf16 operand rounding ---
    out3 = jax.block_until_ready(
        self_atten(q2, k2, v2, mxu_dtype=jnp.bfloat16))
    assert out3.shape == (B2, Lq2, Dv2)
    assert out3.dtype == jnp.float32
    assert jnp.allclose(out3, ref2, atol=1.5e-1, rtol=1.5e-1), \
        float(jnp.max(jnp.abs(out3 - ref2)))

    # --- 4) non-divisible lengths: divisor-based tile picking (no full-extent
    #        VMEM blowup), small Dv left unpadded ---
    B4, Lq4, Lk4, D4, Dv4 = 2, 40, 192, 32, 64
    q4 = jax.random.normal(keys[6], (B4, Lq4, D4), dtype=jnp.float32)
    k4 = jax.random.normal(keys[7], (B4, Lk4, D4), dtype=jnp.float32)
    v4 = jax.random.normal(keys[8], (B4, Lk4, Dv4), dtype=jnp.float32)

    out4 = jax.block_until_ready(self_atten(q4, k4, v4, tq=16, tk=64))
    ref4 = _reference(q4, k4, v4)
    assert out4.shape == (B4, Lq4, Dv4)
    assert jnp.allclose(out4, ref4, atol=2e-2, rtol=2e-2), \
        float(jnp.max(jnp.abs(out4 - ref4)))

    print("KERNEL_OK")
</pallas_src>

<mosaic_0001>
module attributes {stable_mosaic.version = 11 : i64} {
  func.func @_flash_atten_kernel(%arg0: i32, %arg1: i32, %arg2: i32, %arg3: memref<2x8x32xf32, #tpu.memory_space<vmem>>, %arg4: memref<2x8x32xf32, #tpu.memory_space<vmem>>, %arg5: memref<2x8x32xf32, #tpu.memory_space<vmem>>, %arg6: memref<2x8x32xf32, #tpu.memory_space<vmem>>, %arg7: memref<2x8x1xf32, #tpu.memory_space<vmem>>, %arg8: memref<2x8x1xf32, #tpu.memory_space<vmem>>) attributes {dimension_semantics = [#tpu.dimension_semantics<parallel>, #tpu.dimension_semantics<parallel>, #tpu.dimension_semantics<arbitrary>], iteration_bounds = array<i64: 1, 1, 1>, scalar_prefetch = 0 : i64, scratch_operands = 2 : i64, tpu.core_type = #tpu.core_type<tc>, window_params = [{transform_indices = @transform_0, window_bounds = array<i64: 2, 8, 32>}, {transform_indices = @transform_1, window_bounds = array<i64: 2, 8, 32>}, {transform_indices = @transform_2, window_bounds = array<i64: 2, 8, 32>}, {transform_indices = @transform_3, window_bounds = array<i64: 2, 8, 32>}]} {
    %c0_i32 = arith.constant 0 : i32
    %0 = arith.cmpi eq, %arg2, %c0_i32 : i32
    %1 = arith.extui %0 : i1 to i32
    %c0_i32_0 = arith.constant 0 : i32
    %2 = arith.cmpi ne, %1, %c0_i32_0 : i32
    scf.if %2 {
      %cst_32 = arith.constant 0xFF800000 : f32
      %32 = vector.broadcast %cst_32 : f32 to vector<2x8x1xf32>
      %c0_33 = arith.constant 0 : index
      %c0_34 = arith.constant 0 : index
      %c0_35 = arith.constant 0 : index
      %33 = vector.load %arg7[%c0_33, %c0_34, %c0_35] : memref<2x8x1xf32, #tpu.memory_space<vmem>>, vector<2x8x1xf32>
      tpu.vector_store %arg7[%c0_33, %c0_34, %c0_35], %32 {strides = array<i32>} : memref<2x8x1xf32, #tpu.memory_space<vmem>>, vector<2x8x1xf32>,
      %cst_36 = arith.constant 0.000000e+00 : f32
      %34 = vector.broadcast %cst_36 : f32 to vector<2x8x1xf32>
      %c0_37 = arith.constant 0 : index
      %c0_38 = arith.constant 0 : index
      %c0_39 = arith.constant 0 : index
      %35 = vector.load %arg8[%c0_37, %c0_38, %c0_39] : memref<2x8x1xf32, #tpu.memory_space<vmem>>, vector<2x8x1xf32>
      tpu.vector_store %arg8[%c0_37, %c0_38, %c0_39], %34 {strides = array<i32>} : memref<2x8x1xf32, #tpu.memory_space<vmem>>, vector<2x8x1xf32>,
      %cst_40 = arith.constant 0.000000e+00 : f32
      %36 = vector.broadcast %cst_40 : f32 to vector<2x8x32xf32>
      %c0_41 = arith.constant 0 : index
      %c0_42 = arith.constant 0 : index
      %c0_43 = arith.constant 0 : index
      %37 = vector.load %arg6[%c0_41, %c0_42, %c0_43] : memref<2x8x32xf32, #tpu.memory_space<vmem>>, vector<2x8x32xf32>
      tpu.vector_store %arg6[%c0_41, %c0_42, %c0_43], %36 {strides = array<i32>} : memref<2x8x32xf32, #tpu.memory_space<vmem>>, vector<2x8x32xf32>,
    } else {
    }
    %c0 = arith.constant 0 : index
    %c0_1 = arith.constant 0 : index
    %c0_2 = arith.constant 0 : index
    %3 = vector.load %arg3[%c0, %c0_1, %c0_2] : memref<2x8x32xf32, #tpu.memory_space<vmem>>, vector<2x8x32xf32>
    %c0_3 = arith.constant 0 : index
    %c0_4 = arith.constant 0 : index
    %c0_5 = arith.constant 0 : index
    %4 = vector.load %arg4[%c0_3, %c0_4, %c0_5] : memref<2x8x32xf32, #tpu.memory_space<vmem>>, vector<2x8x32xf32>
    %c0_6 = arith.constant 0 : index
    %c0_7 = arith.constant 0 : index
    %c0_8 = arith.constant 0 : index
    %5 = vector.load %arg5[%c0_6, %c0_7, %c0_8] : memref<2x8x32xf32, #tpu.memory_space<vmem>>, vector<2x8x32xf32>
    %cst = arith.constant dense<0.000000e+00> : vector<2x8x8xf32>
    %6 = tpu.matmul %3, %4, %cst {dimension_numbers = #tpu.dot_dimension_numbers<[2], [2], [1], [1], [0, 0, 0, 1, 1, 1], [0], [0]>} : vector<2x8x32xf32>, vector<2x8x32xf32>, vector<2x8x8xf32> -> vector<2x8x8xf32>
    %c0_9 = arith.constant 0 : index
    %c0_10 = arith.constant 0 : index
    %c0_11 = arith.constant 0 : index
    %7 = vector.load %arg7[%c0_9, %c0_10, %c0_11] : memref<2x8x1xf32, #tpu.memory_space<vmem>>, vector<2x8x1xf32>
    %cst_12 = arith.constant dense<0xFF800000> : vector<2x8xf32>
    %8 = vector.multi_reduction <maximumf>, %6, %cst_12 [2] : vector<2x8x8xf32> to vector<2x8xf32>
    %9 = vector.shape_cast %8 : vector<2x8xf32> to vector<2x8x1xf32>
    %10 = arith.maximumf %7, %9 : vector<2x8x1xf32>
    %11 = arith.subf %7, %10 : vector<2x8x1xf32>
    %12 = math.exp %11 : vector<2x8x1xf32>
    %13 = vector.broadcast %10 : vector<2x8x1xf32> to vector<2x8x8xf32>
    %14 = arith.subf %6, %13 : vector<2x8x8xf32>
    %15 = math.exp %14 : vector<2x8x8xf32>
    %cst_13 = arith.constant dense<0.000000e+00> : vector<2x8xf32>
    %16 = vector.multi_reduction <add>, %15, %cst_13 [2] : vector<2x8x8xf32> to vector<2x8xf32>
    %17 = vector.shape_cast %16 : vector<2x8xf32> to vector<2x8x1xf32>
    %c0_14 = arith.constant 0 : index
    %c0_15 = arith.constant 0 : index
    %c0_16 = arith.constant 0 : index
    %18 = vector.load %arg8[%c0_14, %c0_15, %c0_16] : memref<2x8x1xf32, #tpu.memory_space<vmem>>, vector<2x8x1xf32>
    %19 = arith.mulf %12, %18 : vector<2x8x1xf32>
    %20 = arith.addf %19, %17 : vector<2x8x1xf32>
    %c0_17 = arith.constant 0 : index
    %c0_18 = arith.constant 0 : index
    %c0_19 = arith.constant 0 : index
    %21 = vector.load %arg8[%c0_17, %c0_18, %c0_19] : memref<2x8x1xf32, #tpu.memory_space<vmem>>, vector<2x8x1xf32>
    tpu.vector_store %arg8[%c0_17, %c0_18, %c0_19], %20 {strides = array<i32>} : memref<2x8x1xf32, #tpu.memory_space<vmem>>, vector<2x8x1xf32>,
    %cst_20 = arith.constant dense<0.000000e+00> : vector<2x8x32xf32>
    %22 = tpu.matmul %15, %5, %cst_20 {dimension_numbers = #tpu.dot_dimension_numbers<[2], [1], [1], [2], [0, 0, 0, 1, 1, 2], [0], [0]>} : vector<2x8x8xf32>, vector<2x8x32xf32>, vector<2x8x32xf32> -> vector<2x8x32xf32>
    %c0_21 = arith.constant 0 : index
    %c0_22 = arith.constant 0 : index
    %c0_23 = arith.constant 0 : index
    %23 = vector.load %arg6[%c0_21, %c0_22, %c0_23] : memref<2x8x32xf32, #tpu.memory_space<vmem>>, vector<2x8x32xf32>
    %24 = vector.broadcast %12 : vector<2x8x1xf32> to vector<2x8x32xf32>
    %25 = arith.mulf %24, %23 : vector<2x8x32xf32>
    %26 = arith.addf %25, %22 : vector<2x8x32xf32>
    %c0_24 = arith.constant 0 : index
    %c0_25 = arith.constant 0 : index
    %c0_26 = arith.constant 0 : index
    %27 = vector.load %arg6[%c0_24, %c0_25, %c0_26] : memref<2x8x32xf32, #tpu.memory_space<vmem>>, vector<2x8x32xf32>
    tpu.vector_store %arg6[%c0_24, %c0_25, %c0_26], %26 {strides = array<i32>} : memref<2x8x32xf32, #tpu.memory_space<vmem>>, vector<2x8x32xf32>,
    %c0_27 = arith.constant 0 : index
    %c0_28 = arith.constant 0 : index
    %c0_29 = arith.constant 0 : index
    %28 = vector.load %arg7[%c0_27, %c0_28, %c0_29] : memref<2x8x1xf32, #tpu.memory_space<vmem>>, vector<2x8x1xf32>
    tpu.vector_store %arg7[%c0_27, %c0_28, %c0_29], %10 {strides = array<i32>} : memref<2x8x1xf32, #tpu.memory_space<vmem>>, vector<2x8x1xf32>,
    %c0_i32_30 = arith.constant 0 : i32
    %29 = arith.cmpi eq, %arg2, %c0_i32_30 : i32
    %30 = arith.extui %29 : i1 to i32
    %c0_i32_31 = arith.constant 0 : i32
    %31 = arith.cmpi ne, %30, %c0_i32_31 : i32
    scf.if %31 {
      %c0_32 = arith.constant 0 : index
      %c0_33 = arith.constant 0 : index
      %c0_34 = arith.constant 0 : index
      %32 = vector.load %arg8[%c0_32, %c0_33, %c0_34] : memref<2x8x1xf32, #tpu.memory_space<vmem>>, vector<2x8x1xf32>
      %33 = tpu.reciprocal %32 {approx = true} : vector<2x8x1xf32> -> vector<2x8x1xf32>
      %c0_35 = arith.constant 0 : index
      %c0_36 = arith.constant 0 : index
      %c0_37 = arith.constant 0 : index
      %34 = vector.load %arg6[%c0_35, %c0_36, %c0_37] : memref<2x8x32xf32, #tpu.memory_space<vmem>>, vector<2x8x32xf32>
      %35 = vector.broadcast %33 : vector<2x8x1xf32> to vector<2x8x32xf32>
      %36 = arith.mulf %34, %35 : vector<2x8x32xf32>
      %c0_38 = arith.constant 0 : index
      %c0_39 = arith.constant 0 : index
      %c0_40 = arith.constant 0 : index
      %37 = vector.load %arg6[%c0_38, %c0_39, %c0_40] : memref<2x8x32xf32, #tpu.memory_space<vmem>>, vector<2x8x32xf32>
      tpu.vector_store %arg6[%c0_38, %c0_39, %c0_40], %36 {strides = array<i32>} : memref<2x8x32xf32, #tpu.memory_space<vmem>>, vector<2x8x32xf32>,
    } else {
    }
    return
  }
  func.func @transform_0(%arg0: i32, %arg1: i32, %arg2: i32) -> (i32, i32, i32) {
    %c0_i32 = arith.constant 0 : i32
    %c0_i32_0 = arith.constant 0 : i32
    return %arg0, %arg1, %c0_i32 : i32, i32, i32
  }
  func.func @transform_1(%arg0: i32, %arg1: i32, %arg2: i32) -> (i32, i32, i32) {
    %c0_i32 = arith.constant 0 : i32
    %c0_i32_0 = arith.constant 0 : i32
    return %arg0, %arg2, %c0_i32 : i32, i32, i32
  }
  func.func @transform_2(%arg0: i32, %arg1: i32, %arg2: i32) -> (i32, i32, i32) {
    %c0_i32 = arith.constant 0 : i32
    %c0_i32_0 = arith.constant 0 : i32
    return %arg0, %arg2, %c0_i32 : i32, i32, i32
  }
  func.func @transform_3(%arg0: i32, %arg1: i32, %arg2: i32) -> (i32, i32, i32) {
    %c0_i32 = arith.constant 0 : i32
    %c0_i32_0 = arith.constant 0 : i32
    return %arg0, %arg1, %c0_i32 : i32, i32, i32
  }
}

</mosaic_0001>

<llo_original>
// kernel: tpu_custom_call.1
$region0: #{tpu_custom_call.1}
  #allocation0 [shape = 'u32[]', space=smem, size = 0x4, offset = 0x4, fixed_abs, tag = 'smem constant byte address 0x4 - core index']
  #allocation1 [shape = 'u32[144,128]{1,0:T(1,128)}', space=vmem, size = 0x12000, scoped, tag = 'internal scratch']
  #allocation2 [shape = 'f32[2,8,1]{2,1,0:T(8,128)}', space=vmem, size = 0x2000, scoped, tag = 'scratch operand']
  #allocation3 [shape = 'f32[2,8,1]{2,1,0:T(8,128)}', space=vmem, size = 0x2000, scoped, tag = 'scratch operand']
  %s0 = inlined_call_operand.hbm [shape: f32[2,8,32], index: 0, kind: input, shape index: {}]
  %s1 = inlined_call_operand.hbm [shape: f32[2,8,32], index: 1, kind: input, shape index: {}]
  %s2 = inlined_call_operand.hbm [shape: f32[2,8,32], index: 2, kind: input, shape index: {}]
  %s3 = inlined_call_operand.hbm [shape: f32[2,8,32], index: 3, kind: output, shape index: {}]
  %s4 = sld [smem:[#allocation0]]
  $region42: #{tpu_custom_call.1} parent=0
    _
  %s6 = ssub.s32 1, %s4
  %s7 = scalar_select 0, %s6, %s4
  $region1: #{tpu_custom_call.1} parent=0
    #allocation4 [shape = 'u8[8192]{0}', space=vmem, size = 0x2000, scoped, tag = 'input window, operand 0, single buffered']
    #allocation5 [shape = 's32[1]{0}', space=sflag, size = 0x4, scoped, tag = 'scoped memory for tpu_custom_call.1']
    #allocation6 [shape = 's32[1]{0}', space=sflag, size = 0x4, scoped, tag = 'scoped memory for tpu_custom_call.1']
    #allocation7 [shape = 'u8[8192]{0}', space=vmem, size = 0x2000, scoped, tag = 'input window, operand 1, single buffered']
    #allocation8 [shape = 's32[1]{0}', space=sflag, size = 0x4, scoped, tag = 'scoped memory for tpu_custom_call.1']
    #allocation9 [shape = 'u8[8192]{0}', space=vmem, size = 0x2000, scoped, tag = 'input window, operand 2, single buffered']
    #allocation10 [shape = 'u8[8192]{0}', space=vmem, size = 0x2000, scoped, tag = 'output window, operand 0, single buffered']
    %8 = vsyncpa [#allocation5], 0
    %9 = vsyncpa [#allocation8], 0
    %10 = vsyncpa [#allocation6], 0
    // Predicated region
    $region2: #{tpu_custom_call.1} parent=1 // pred_check
      _
    $region3: #{tpu_custom_call.1} parent=1 // pred_check_branch
      %12 = sbr.rel (0) target = $region5
    $region4: #{tpu_custom_call.1} parent=1 // pred_region
      %s14 = ssub.s32 256, 256
      %15 = vsyncadd [#allocation5], %s14
      %s16 = sshll.u32 [#allocation4], 4
      %s17 = int_to_ptr.vmem [resolvable:$true] %s16
      %22 = dma.hbm_to_vmem [thread:$0]  %s0, 256, %s17, [#allocation5], 128, 128, 8
    $region5: #{tpu_custom_call.1} parent=1 // pred_fallthru
      _
    // Predicated region
    $region6: #{tpu_custom_call.1} parent=1 // pred_check
      _
    $region7: #{tpu_custom_call.1} parent=1 // pred_check_branch
      %24 = sbr.rel (0) target = $region9
    $region8: #{tpu_custom_call.1} parent=1 // pred_region
      %s26 = ssub.s32 256, 256
      %27 = vsyncadd [#allocation8], %s26
      %s28 = sshll.u32 [#allocation7], 4
      %s29 = int_to_ptr.vmem [resolvable:$true] %s28
      %34 = dma.hbm_to_vmem [thread:$0]  %s1, 256, %s29, [#allocation8], 128, 128, 8
    $region9: #{tpu_custom_call.1} parent=1 // pred_fallthru
      _
    // Predicated region
    $region10: #{tpu_custom_call.1} parent=1 // pred_check
      _
    $region11: #{tpu_custom_call.1} parent=1 // pred_check_branch
      %36 = sbr.rel (0) target = $region13
    $region12: #{tpu_custom_call.1} parent=1 // pred_region
      %s38 = ssub.s32 256, 256
      %39 = vsyncadd [#allocation8], %s38
      %s40 = sshll.u32 [#allocation9], 4
      %s41 = int_to_ptr.vmem [resolvable:$true] %s40
      %46 = dma.hbm_to_vmem [thread:$0]  %s2, 256, %s41, [#allocation8], 128, 128, 8
    $region13: #{tpu_custom_call.1} parent=1 // pred_fallthru
      _
    // Predicated region
    $region14: #{tpu_custom_call.1} parent=1 // pred_check
      _
    $region15: #{tpu_custom_call.1} parent=1 // pred_check_branch
      %48 = sbr.rel (0) target = $region17
    $region16: #{tpu_custom_call.1} parent=1 // pred_region
      %49 = dma.done [#allocation5], 256
    $region17: #{tpu_custom_call.1} parent=1 // pred_fallthru
      _
    // Predicated region
    $region18: #{tpu_custom_call.1} parent=1 // pred_check
      _
    $region19: #{tpu_custom_call.1} parent=1 // pred_check_branch
      %51 = sbr.rel (0) target = $region21
    $region20: #{tpu_custom_call.1} parent=1 // pred_region
      %52 = dma.done [#allocation8], 256
    $region21: #{tpu_custom_call.1} parent=1 // pred_fallthru
      _
    // Predicated region
    $region22: #{tpu_custom_call.1} parent=1 // pred_check
      _
    $region23: #{tpu_custom_call.1} parent=1 // pred_check_branch
      %54 = sbr.rel (0) target = $region25
    $region24: #{tpu_custom_call.1} parent=1 // pred_region
      %55 = dma.done [#allocation8], 256
    $region25: #{tpu_custom_call.1} parent=1 // pred_fallthru
      _
    %p56 = scmp.eq.s32.totalorder 0, 0
    // Predicated region
    $region26: #{tpu_custom_call.1} parent=1 // pred_check
      %p57 = pneg %p56
    $region27: #{tpu_custom_call.1} parent=1 // pred_check_branch
      %59 = sbr.rel (%p57) target = $region29
    $region28: #{tpu_custom_call.1} parent=1 // pred_region
      %vm60 = vcmask 7168
      %61 = vst.msk [vmem:[#allocation2] sm:$0xff] %vm60, -inf
      %62 = vst.msk [vmem:[#allocation2 + $0x8] sm:$0xff] %vm60, -inf
      %63 = vst.msk [vmem:[#allocation3] sm:$0xff] %vm60, 0.0
      %64 = vst.msk [vmem:[#allocation3 + $0x8] sm:$0xff] %vm60, 0.0
      %vm65 = vcmask 261120
      %66 = vst.msk [vmem:[#allocation10] sm:$0xff] %vm65, 0.0
      %67 = vst.msk [vmem:[#allocation10 + $0x8] sm:$0xff] %vm65, 0.0
    $region29: #{tpu_custom_call.1} parent=1 // pred_fallthru
      _
    %v68 = vld [vmem:[#allocation4] sm:$0xff]
    %v69 = vld [vmem:[#allocation4 + $0x8] sm:$0xff]
    %v70 = vld [vmem:[#allocation7] sm:$0xff]
    %v71 = vld [vmem:[#allocation7 + $0x8] sm:$0xff]
    %v72 = vld [vmem:[#allocation9] sm:$0xff]
    %v73 = vld [vmem:[#allocation9 + $0x8] sm:$0xff]
    %vm74 = vcmask 261120
    %v76 = vsel %vm74, %v68, 0
    %v79 = vsel %vm74, %v70, 0
    %81 = vmatprep.subr.mxu0 0.0
    %82 = vmatpush1.xpose.msra.mxu0 %v79
    %83 = vmatprep.subr.mxu0 0.0
    %84 = vmatpush1.xpose.msra.mxu0 0.0
    %85 = vmatprep.subr.mxu0 0.0
    %86 = vmatpush1.xpose.msra.mxu0 0.0
    %87 = vmatprep.subr.mxu0 0.0
    %88 = vmatpush1.xpose.msra.mxu0 0.0
    %89 = vmatprep.subr.mxu0 0.0
    %90 = vmatpush1.xpose.msra.mxu0 0.0
    %91 = vmatprep.subr.mxu0 0.0
    %92 = vmatpush1.xpose.msra.mxu0 0.0
    %93 = vmatprep.subr.mxu0 0.0
    %94 = vmatpush1.xpose.msra.mxu0 0.0
    %95 = vmatprep.subr.mxu0 0.0
    %96 = vmatpush1.xpose.msra.mxu0 0.0
    %97 = vmatprep.subr.mxu0 0.0
    %98 = vmatpush1.xpose.msra.mxu0 0.0
    %99 = vmatprep.subr.mxu0 0.0
    %100 = vmatpush1.xpose.msra.mxu0 0.0
    %101 = vmatprep.subr.mxu0 0.0
    %102 = vmatpush1.xpose.msra.mxu0 0.0
    %103 = vmatprep.subr.mxu0 0.0
    %104 = vmatpush1.xpose.msra.mxu0 0.0
    %105 = vmatprep.subr.mxu0 0.0
    %106 = vmatpush1.xpose.msra.mxu0 0.0
    %107 = vmatprep.subr.mxu0 0.0
    %108 = vmatpush1.xpose.msra.mxu0 0.0
    %109 = vmatprep.subr.mxu0 0.0
    %110 = vmatpush1.xpose.msra.mxu0 0.0
    %111 = vmatprep.subr.mxu0 0.0
    %112 = vmatpush1.xpose.msra.mxu0 0.0
    %113 = vmatprep.subr.mxu0 0.0
    %114 = vmatpush1.xpose.msra.mxu0 0.0
    %115 = vmatprep.subr.mxu0 0.0
    %116 = vmatpush1.xpose.msra.mxu0 0.0
    %117 = vmatprep.subr.mxu0 0.0
    %118 = vmatpush1.xpose.msra.mxu0 0.0
    %119 = vmatprep.subr.mxu0 0.0
    %120 = vmatpush1.xpose.msra.mxu0 0.0
    %121 = vmatprep.subr.mxu0 0.0
    %122 = vmatpush1.xpose.msra.mxu0 0.0
    %123 = vmatprep.subr.mxu0 0.0
    %124 = vmatpush1.xpose.msra.mxu0 0.0
    %125 = vmatprep.subr.mxu0 0.0
    %126 = vmatpush1.xpose.msra.mxu0 0.0
    %127 = vmatprep.subr.mxu0 0.0
    %128 = vmatpush1.xpose.msra.mxu0 0.0
    %129 = vmatprep.subr.mxu0 0.0
    %130 = vmatpush1.xpose.msra.mxu0 0.0
    %131 = vmatprep.subr.mxu0 0.0
    %132 = vmatpush1.xpose.msra.mxu0 0.0
    %133 = vmatprep.subr.mxu0 0.0
    %134 = vmatpush1.xpose.msra.mxu0 0.0
    %135 = vmatprep.subr.mxu0 0.0
    %136 = vmatpush1.xpose.msra.mxu0 0.0
    %137 = vmatprep.subr.mxu0 0.0
    %138 = vmatpush1.xpose.msra.mxu0 0.0
    %139 = vmatprep.subr.mxu0 0.0
    %140 = vmatpush1.xpose.msra.mxu0 0.0
    %141 = vmatprep.subr.mxu0 0.0
    %142 = vmatpush1.xpose.msra.mxu0 0.0
    %143 = vmatprep.subr.mxu0 0.0
    %144 = vmatpush1.xpose.msra.mxu0 0.0
    %145 = vmatprep.mubr.f32.mxu0 0.0
    %146 = vmatmul.mubr.f32.gmra.mrb[0].mxu0 %v76
    %v147 = vpop.f32.mrb[0].mxu0
    %v148 = vadd.f32 0.0, %v147
    %v149 = vpop.f32.mrb[0].mxu0
    %150 = vdwg.mxu0
    %v152 = vsel %vm74, %v69, 0
    %v155 = vsel %vm74, %v71, 0
    %157 = vmatprep.subr.mxu0 0.0
    %158 = vmatpush1.xpose.msra.mxu0 %v155
    %159 = vmatprep.subr.mxu0 0.0
    %160 = vmatpush1.xpose.msra.mxu0 0.0
    %161 = vmatprep.subr.mxu0 0.0
    %162 = vmatpush1.xpose.msra.mxu0 0.0
    %163 = vmatprep.subr.mxu0 0.0
    %164 = vmatpush1.xpose.msra.mxu0 0.0
    %165 = vmatprep.subr.mxu0 0.0
    %166 = vmatpush1.xpose.msra.mxu0 0.0
    %167 = vmatprep.subr.mxu0 0.0
    %168 = vmatpush1.xpose.msra.mxu0 0.0
    %169 = vmatprep.subr.mxu0 0.0
    %170 = vmatpush1.xpose.msra.mxu0 0.0
    %171 = vmatprep.subr.mxu0 0.0
    %172 = vmatpush1.xpose.msra.mxu0 0.0
    %173 = vmatprep.subr.mxu0 0.0
    %174 = vmatpush1.xpose.msra.mxu0 0.0
    %175 = vmatprep.subr.mxu0 0.0
    %176 = vmatpush1.xpose.msra.mxu0 0.0
    %177 = vmatprep.subr.mxu0 0.0
    %178 = vmatpush1.xpose.msra.mxu0 0.0
    %179 = vmatprep.subr.mxu0 0.0
    %180 = vmatpush1.xpose.msra.mxu0 0.0
    %181 = vmatprep.subr.mxu0 0.0
    %182 = vmatpush1.xpose.msra.mxu0 0.0
    %183 = vmatprep.subr.mxu0 0.0
    %184 = vmatpush1.xpose.msra.mxu0 0.0
    %185 = vmatprep.subr.mxu0 0.0
    %186 = vmatpush1.xpose.msra.mxu0 0.0
    %187 = vmatprep.subr.mxu0 0.0
    %188 = vmatpush1.xpose.msra.mxu0 0.0
    %189 = vmatprep.subr.mxu0 0.0
    %190 = vmatpush1.xpose.msra.mxu0 0.0
    %191 = vmatprep.subr.mxu0 0.0
    %192 = vmatpush1.xpose.msra.mxu0 0.0
    %193 = vmatprep.subr.mxu0 0.0
    %194 = vmatpush1.xpose.msra.mxu0 0.0
    %195 = vmatprep.subr.mxu0 0.0
    %196 = vmatpush1.xpose.msra.mxu0 0.0
    %197 = vmatprep.subr.mxu0 0.0
    %198 = vmatpush1.xpose.msra.mxu0 0.0
    %199 = vmatprep.subr.mxu0 0.0
    %200 = vmatpush1.xpose.msra.mxu0 0.0
    %201 = vmatprep.subr.mxu0 0.0
    %202 = vmatpush1.xpose.msra.mxu0 0.0
    %203 = vmatprep.subr.mxu0 0.0
    %204 = vmatpush1.xpose.msra.mxu0 0.0
    %205 = vmatprep.subr.mxu0 0.0
    %206 = vmatpush1.xpose.msra.mxu0 0.0
    %207 = vmatprep.subr.mxu0 0.0
    %208 = vmatpush1.xpose.msra.mxu0 0.0
    %209 = vmatprep.subr.mxu0 0.0
    %210 = vmatpush1.xpose.msra.mxu0 0.0
    %211 = vmatprep.subr.mxu0 0.0
    %212 = vmatpush1.xpose.msra.mxu0 0.0
    %213 = vmatprep.subr.mxu0 0.0
    %214 = vmatpush1.xpose.msra.mxu0 0.0
    %215 = vmatprep.subr.mxu0 0.0
    %216 = vmatpush1.xpose.msra.mxu0 0.0
    %217 = vmatprep.subr.mxu0 0.0
    %218 = vmatpush1.xpose.msra.mxu0 0.0
    %219 = vmatprep.subr.mxu0 0.0
    %220 = vmatpush1.xpose.msra.mxu0 0.0
    %221 = vmatprep.mubr.f32.mxu0 0.0
    %222 = vmatmul.mubr.f32.gmra.mrb[0].mxu0 %v152
    %v223 = vpop.f32.mrb[0].mxu0
    %v224 = vadd.f32 0.0, %v223
    %v225 = vpop.f32.mrb[0].mxu0
    %226 = vdwg.mxu0
    %v227 = vld [vmem:[#allocation2] sm:$0xff]
    %v228 = vld [vmem:[#allocation2 + $0x8] sm:$0xff]
    %vm229 = vcmask 64512
    %v230 = vsel %vm229, %v148, -inf
    %231 = vmax.xlane.f32.xlu0 %v230
    %v232 = vpop.xlane.xlu0 %231
    %v233 = vsel %vm229, %v224, -inf
    %234 = vmax.xlane.f32.xlu0 %v233
    %v235 = vpop.xlane.xlu0 %234
    %v236 = vmax.f32 %v227, %v232
    %v237 = vmax.f32 %v228, %v235
    %v238 = vsub.f32 %v227, %v236
    %v239 = vsub.f32 %v228, %v237
    %v240 = vmul.f32 %v238, 1.442695
    %v241 = vpow.pop %v240
    %v242 = vmul.f32 %v239, 1.442695
    %v243 = vpow.pop %v242
    %245 = vset.pattern.permute.xlu0 0
    %246 = vperm.xlu0 %245, %v236
    %v247 = vpop.permute.xlu0 %246
    %250 = vset.pattern.permute.xlu0 0
    %251 = vperm.xlu0 %250, %v237
    %v252 = vpop.permute.xlu0 %251
    %v254 = vsub.f32 %v148, %v247
    %v255 = vsub.f32 %v224, %v252
    %v256 = vmul.f32 %v254, 1.442695
    %v257 = vpow.pop %v256
    %v258 = vmul.f32 %v255, 1.442695
    %v259 = vpow.pop %v258
    %v260 = vsel %vm229, %v257, 0.0
    %261 = vadd.xlane.f32.xlu0 %v260
    %v262 = vpop.xlane.xlu0 %261
    %v263 = vsel %vm229, %v259, 0.0
    %264 = vadd.xlane.f32.xlu0 %v263
    %v265 = vpop.xlane.xlu0 %264
    %v266 = vld [vmem:[#allocation3] sm:$0xff]
    %v267 = vld [vmem:[#allocation3 + $0x8] sm:$0xff]
    %v268 = vmul.f32 %v241, %v266
    %v269 = vmul.f32 %v243, %v267
    %v270 = vadd.f32 %v268, %v262
    %v271 = vadd.f32 %v269, %v265
    %vm272 = vcmask 7168
    %273 = vst.msk [vmem:[#allocation3] sm:$0xff] %vm272, %v270
    %274 = vst.msk [vmem:[#allocation3 + $0x8] sm:$0xff] %vm272, %v271
    %v276 = vsel %vm229, %v257, 0
    %278 = vmatprep.subr.mxu0 0.0
    %279 = vmatpush1.msra.mxu0 %v72
    %280 = vmatprep.subr.mxu0 0.0
    %281 = vmatpush1.msra.mxu0 0.0
    %282 = vmatprep.subr.mxu0 0.0
    %283 = vmatpush1.msra.mxu0 0.0
    %284 = vmatprep.subr.mxu0 0.0
    %285 = vmatpush1.msra.mxu0 0.0
    %286 = vmatprep.subr.mxu0 0.0
    %287 = vmatpush1.msra.mxu0 0.0
    %288 = vmatprep.subr.mxu0 0.0
    %289 = vmatpush1.msra.mxu0 0.0
    %290 = vmatprep.subr.mxu0 0.0
    %291 = vmatpush1.msra.mxu0 0.0
    %292 = vmatprep.subr.mxu0 0.0
    %293 = vmatpush1.msra.mxu0 0.0
    %294 = vmatprep.subr.mxu0 0.0
    %295 = vmatpush1.msra.mxu0 0.0
    %296 = vmatprep.subr.mxu0 0.0
    %297 = vmatpush1.msra.mxu0 0.0
    %298 = vmatprep.subr.mxu0 0.0
    %299 = vmatpush1.msra.mxu0 0.0
    %300 = vmatprep.subr.mxu0 0.0
    %301 = vmatpush1.msra.mxu0 0.0
    %302 = vmatprep.subr.mxu0 0.0
    %303 = vmatpush1.msra.mxu0 0.0
    %304 = vmatprep.subr.mxu0 0.0
    %305 = vmatpush1.msra.mxu0 0.0
    %306 = vmatprep.subr.mxu0 0.0
    %307 = vmatpush1.msra.mxu0 0.0
    %308 = vmatprep.subr.mxu0 0.0
    %309 = vmatpush1.msra.mxu0 0.0
    %310 = vmatprep.subr.mxu0 0.0
    %311 = vmatpush1.msra.mxu0 0.0
    %312 = vmatprep.subr.mxu0 0.0
    %313 = vmatpush1.msra.mxu0 0.0
    %314 = vmatprep.subr.mxu0 0.0
    %315 = vmatpush1.msra.mxu0 0.0
    %316 = vmatprep.subr.mxu0 0.0
    %317 = vmatpush1.msra.mxu0 0.0
    %318 = vmatprep.subr.mxu0 0.0
    %319 = vmatpush1.msra.mxu0 0.0
    %320 = vmatprep.subr.mxu0 0.0
    %321 = vmatpush1.msra.mxu0 0.0
    %322 = vmatprep.subr.mxu0 0.0
    %323 = vmatpush1.msra.mxu0 0.0
    %324 = vmatprep.subr.mxu0 0.0
    %325 = vmatpush1.msra.mxu0 0.0
    %326 = vmatprep.subr.mxu0 0.0
    %327 = vmatpush1.msra.mxu0 0.0
    %328 = vmatprep.subr.mxu0 0.0
    %329 = vmatpush1.msra.mxu0 0.0
    %330 = vmatprep.subr.mxu0 0.0
    %331 = vmatpush1.msra.mxu0 0.0
    %332 = vmatprep.subr.mxu0 0.0
    %333 = vmatpush1.msra.mxu0 0.0
    %334 = vmatprep.subr.mxu0 0.0
    %335 = vmatpush1.msra.mxu0 0.0
    %336 = vmatprep.subr.mxu0 0.0
    %337 = vmatpush1.msra.mxu0 0.0
    %338 = vmatprep.subr.mxu0 0.0
    %339 = vmatpush1.msra.mxu0 0.0
    %340 = vmatprep.subr.mxu0 0.0
    %341 = vmatpush1.msra.mxu0 0.0
    %342 = vmatprep.mubr.f32.mxu0 0.0
    %343 = vmatmul.mubr.f32.gmra.mrb[0].mxu0 %v276
    %v344 = vpop.f32.mrb[0].mxu0
    %v345 = vadd.f32 0.0, %v344
    %v346 = vpop.f32.mrb[0].mxu0
    %347 = vdwg.mxu0
    %v349 = vsel %vm229, %v259, 0
    %351 = vmatprep.subr.mxu0 0.0
    %352 = vmatpush1.msra.mxu0 %v73
    %353 = vmatprep.subr.mxu0 0.0
    %354 = vmatpush1.msra.mxu0 0.0
    %355 = vmatprep.subr.mxu0 0.0
    %356 = vmatpush1.msra.mxu0 0.0
    %357 = vmatprep.subr.mxu0 0.0
    %358 = vmatpush1.msra.mxu0 0.0
    %359 = vmatprep.subr.mxu0 0.0
    %360 = vmatpush1.msra.mxu0 0.0
    %361 = vmatprep.subr.mxu0 0.0
    %362 = vmatpush1.msra.mxu0 0.0
    %363 = vmatprep.subr.mxu0 0.0
    %364 = vmatpush1.msra.mxu0 0.0
    %365 = vmatprep.subr.mxu0 0.0
    %366 = vmatpush1.msra.mxu0 0.0
    %367 = vmatprep.subr.mxu0 0.0
    %368 = vmatpush1.msra.mxu0 0.0
    %369 = vmatprep.subr.mxu0 0.0
    %370 = vmatpush1.msra.mxu0 0.0
    %371 = vmatprep.subr.mxu0 0.0
    %372 = vmatpush1.msra.mxu0 0.0
    %373 = vmatprep.subr.mxu0 0.0
    %374 = vmatpush1.msra.mxu0 0.0
    %375 = vmatprep.subr.mxu0 0.0
    %376 = vmatpush1.msra.mxu0 0.0
    %377 = vmatprep.subr.mxu0 0.0
    %378 = vmatpush1.msra.mxu0 0.0
    %379 = vmatprep.subr.mxu0 0.0
    %380 = vmatpush1.msra.mxu0 0.0
    %381 = vmatprep.subr.mxu0 0.0
    %382 = vmatpush1.msra.mxu0 0.0
    %383 = vmatprep.subr.mxu0 0.0
    %384 = vmatpush1.msra.mxu0 0.0
    %385 = vmatprep.subr.mxu0 0.0
    %386 = vmatpush1.msra.mxu0 0.0
    %387 = vmatprep.subr.mxu0 0.0
    %388 = vmatpush1.msra.mxu0 0.0
    %389 = vmatprep.subr.mxu0 0.0
    %390 = vmatpush1.msra.mxu0 0.0
    %391 = vmatprep.subr.mxu0 0.0
    %392 = vmatpush1.msra.mxu0 0.0
    %393 = vmatprep.subr.mxu0 0.0
    %394 = vmatpush1.msra.mxu0 0.0
    %395 = vmatprep.subr.mxu0 0.0
    %396 = vmatpush1.msra.mxu0 0.0
    %397 = vmatprep.subr.mxu0 0.0
    %398 = vmatpush1.msra.mxu0 0.0
    %399 = vmatprep.subr.mxu0 0.0
    %400 = vmatpush1.msra.mxu0 0.0
    %401 = vmatprep.subr.mxu0 0.0
    %402 = vmatpush1.msra.mxu0 0.0
    %403 = vmatprep.subr.mxu0 0.0
    %404 = vmatpush1.msra.mxu0 0.0
    %405 = vmatprep.subr.mxu0 0.0
    %406 = vmatpush1.msra.mxu0 0.0
    %407 = vmatprep.subr.mxu0 0.0
    %408 = vmatpush1.msra.mxu0 0.0
    %409 = vmatprep.subr.mxu0 0.0
    %410 = vmatpush1.msra.mxu0 0.0
    %411 = vmatprep.subr.mxu0 0.0
    %412 = vmatpush1.msra.mxu0 0.0
    %413 = vmatprep.subr.mxu0 0.0
    %414 = vmatpush1.msra.mxu0 0.0
    %415 = vmatprep.mubr.f32.mxu0 0.0
    %416 = vmatmul.mubr.f32.gmra.mrb[0].mxu0 %v349
    %v417 = vpop.f32.mrb[0].mxu0
    %v418 = vadd.f32 0.0, %v417
    %v419 = vpop.f32.mrb[0].mxu0
    %420 = vdwg.mxu0
    %v421 = vld [vmem:[#allocation10] sm:$0xff]
    %v422 = vld [vmem:[#allocation10 + $0x8] sm:$0xff]
    %424 = vset.pattern.permute.xlu0 0
    %425 = vperm.xlu0 %424, %v241
    %v426 = vpop.permute.xlu0 %425
    %429 = vset.pattern.permute.xlu0 0
    %430 = vperm.xlu0 %429, %v243
    %v431 = vpop.permute.xlu0 %430
    %v433 = vmul.f32 %v426, %v421
    %v434 = vmul.f32 %v431, %v422
    %v435 = vadd.f32 %v433, %v345
    %v436 = vadd.f32 %v434, %v418
    %437 = vst.msk [vmem:[#allocation10] sm:$0xff] %vm74, %v435
    %438 = vst.msk [vmem:[#allocation10 + $0x8] sm:$0xff] %vm74, %v436
    %439 = vst.msk [vmem:[#allocation2] sm:$0xff] %vm272, %v236
    %440 = vst.msk [vmem:[#allocation2 + $0x8] sm:$0xff] %vm272, %v237
    // Predicated region
    $region30: #{tpu_custom_call.1} parent=1 // pred_check
      %p441 = pneg %p56
    $region31: #{tpu_custom_call.1} parent=1 // pred_check_branch
      %443 = sbr.rel (%p441) target = $region33
    $region32: #{tpu_custom_call.1} parent=1 // pred_region
      %v444 = vld [vmem:[#allocation3] sm:$0xff]
      %v445 = vld [vmem:[#allocation3 + $0x8] sm:$0xff]
      %v446 = vrcp.pop %v444
      %v447 = vrcp.pop %v445
      %v448 = vld [vmem:[#allocation10] sm:$0xff]
      %v449 = vld [vmem:[#allocation10 + $0x8] sm:$0xff]
      %451 = vset.pattern.permute.xlu0 0
      %452 = vperm.xlu0 %451, %v446
      %v453 = vpop.permute.xlu0 %452
      %456 = vset.pattern.permute.xlu0 0
      %457 = vperm.xlu0 %456, %v447
      %v458 = vpop.permute.xlu0 %457
      %v460 = vmul.f32 %v448, %v453
      %v461 = vmul.f32 %v449, %v458
      %462 = vst.msk [vmem:[#allocation10] sm:$0xff] %vm74, %v460
      %463 = vst.msk [vmem:[#allocation10 + $0x8] sm:$0xff] %vm74, %v461
    $region33: #{tpu_custom_call.1} parent=1 // pred_fallthru
      _
    // Predicated region
    $region34: #{tpu_custom_call.1} parent=1 // pred_check
      _
    $region35: #{tpu_custom_call.1} parent=1 // pred_check_branch
      %465 = sbr.rel (0) target = $region37
    $region36: #{tpu_custom_call.1} parent=1 // pred_region
      %s467 = ssub.s32 256, 256
      %468 = vsyncadd [#allocation6], %s467
      %s469 = sshll.u32 [#allocation10], 4
      %s470 = int_to_ptr.vmem [resolvable:$true] %s469
      %475 = dma.vmem_to_hbm [thread:$0]  %s470, 256, %s3, [#allocation6], 128, 128, 8
    $region37: #{tpu_custom_call.1} parent=1 // pred_fallthru
      _
    // Predicated region
    $region38: #{tpu_custom_call.1} parent=1 // pred_check
      _
    $region39: #{tpu_custom_call.1} parent=1 // pred_check_branch
      %477 = sbr.rel (0) target = $region41
    $region40: #{tpu_custom_call.1} parent=1 // pred_region
      %478 = dma.done [#allocation6], 256
    $region41: #{tpu_custom_call.1} parent=1 // pred_fallthru
      _
    %479 = vsyncpa [#allocation5], 1
    %480 = vsyncpa [#allocation8], 1
    %481 = vsyncpa [#allocation6], 1

</llo_original>
